<compile_context>
chip_gen: v7x
topology: tpu7x:2x2x1
jax: 0.10.0
libtpu: 0.0.40
codegen_flags: <defaults>
</compile_context>

<pallas_src>
import functools

import jax
import jax.numpy as jnp
from jax.experimental import pallas as pl
from jax.experimental.pallas import tpu as pltpu


def _round_up(x, m):
    return (x + m - 1) // m * m


# -----------------------------------------------------------------------------
# Kernel
# -----------------------------------------------------------------------------
def _fused_mlp2_kernel(x_ref, w1_ref, b1_ref, w2_ref, b2_ref, o_ref, h_ref):
    """Fused 2-layer MLP:  out = tanh(x @ W1 + b1) @ W2 + b2.

    Grid = (core split over N2, M tiles, N2 tiles per split).  Refs (VMEM):
      x_ref : (tm, K1)  bf16   (same block for every (c, j))
      w1_ref: (K1, H)   bf16   (whole array, resident; single-buffered if big)
      b1_ref: (1, H)    f32
      w2_ref: (H, tn)   bf16   (column slab, pipelined)
      b2_ref: (1, tn)   f32
      o_ref : (tm, tn)  f32    (lane-dense: tn is a multiple of 128)
      h_ref : (tm, H)   bf16   scratch -- hidden activation, reused over j
    """
    j = pl.program_id(2)

    # Layer 1 (+ tanh) once per (core, M-tile), kept in VMEM scratch for all
    # N2 tiles this core handles.  Safe because the j axis is "arbitrary"
    # (sequential per core) and every core's j range starts at 0.
    @pl.when(j == 0)
    def _():
        h = jnp.dot(x_ref[...], w1_ref[...], preferred_element_type=jnp.float32)
        h = jnp.tanh(h + b1_ref[...])            # f32 bias add + f32 tanh (EUP)
        h_ref[...] = h.astype(h_ref.dtype)       # bf16 for the next MXU pass

    # Layer 2 for this output tile.
    acc = jnp.dot(h_ref[...], w2_ref[...], preferred_element_type=jnp.float32)
    o_ref[...] = (acc + b2_ref[...]).astype(o_ref.dtype)


# -----------------------------------------------------------------------------
# Tiling / VMEM sizing helpers (all static Python ints)
# -----------------------------------------------------------------------------
_VMEM_TILE_BUDGET = 40 << 20    # conservative: fits v7x's 64 MiB/TC VMEM
_BIG_WEIGHT_BYTES = 1 << 20     # single-buffer constant-index weights above this


def _vmem_bytes(tile_m, tile_n, k1p, hp, w1_single):
    w1_bufs = 1 if w1_single else 2
    return (2 * tile_m * k1p * 2          # x tile, bf16, double-buffered
            + w1_bufs * k1p * hp * 2      # W1, bf16
            + w1_bufs * hp * 4            # b1, f32
            + 2 * hp * tile_n * 2         # W2 column slab, bf16, double-buffered
            + 2 * tile_n * 4              # b2 slab, f32
            + 2 * tile_m * tile_n * 4     # output tile, f32, double-buffered
            + tile_m * hp * 2)            # hidden scratch, bf16


def _pick_tile_m(bp):
    # One M tile whenever the batch fits -> W2 streamed from HBM exactly once.
    if bp <= 512:
        assert bp % 8 == 0
        return bp
    for t in (512, 256, 128, 64, 32, 16):
        if bp % t == 0:
            return t
    return 16


def _pick_tile_n(n2p, tile_m, k1p, hp, w1_single):
    # Largest 128-multiple divisor of n2p whose buffer set fits the budget.
    best = 128
    for d in range(n2p // 128, 0, -1):
        tn = d * 128
        if n2p % tn != 0:
            continue
        if _vmem_bytes(tile_m, tn, k1p, hp, w1_single) <= _VMEM_TILE_BUDGET:
            best = tn
            break
    assert best % 128 == 0 and n2p % best == 0, (best, n2p)
    return best


# -----------------------------------------------------------------------------
# Forward (weights arrive already padded + bf16; only x is padded per call)
# -----------------------------------------------------------------------------
@functools.partial(jax.jit, static_argnames=("n_out",))
def mlp2_forward_padded(x, w1_p, b1_p, w2_p, b2_p, *, n_out):
    """x: (B, K1) f32/bf16; w1_p: (K1p, Hp) bf16; b1_p: (1, Hp) f32;
    w2_p: (Hp, N2p) bf16; b2_p: (1, N2p) f32.  Returns (B, n_out) f32."""
    B, K1 = x.shape
    K1p, Hp = w1_p.shape
    N2p = w2_p.shape[1]
    assert K1 <= K1p and n_out <= N2p

    Bp = _round_up(max(B, 1), 16)          # bf16 packs 16 rows per vreg sublane group
    x_p = jnp.pad(x.astype(jnp.bfloat16), ((0, Bp - B), (0, K1p - K1)))

    w1_single = (K1p * Hp * 2) >= _BIG_WEIGHT_BYTES
    tile_m = _pick_tile_m(Bp)
    tile_n = _pick_tile_n(N2p, tile_m, K1p, Hp, w1_single)
    n_i = Bp // tile_m
    n_j = N2p // tile_n

    # Use both v7x TensorCores when the batch fits one M tile: a leading
    # "parallel" axis splits the N2 tile range; each core redundantly computes
    # layer 1 into its own scratch under pl.when(j == 0).
    n_split = 2 if (n_i == 1 and n_j % 2 == 0) else 1
    njps = n_j // n_split                  # N2 tiles per split

    w1_kw = dict(pipeline_mode=pl.Buffered(1)) if w1_single else {}

    vmem_need = _vmem_bytes(tile_m, tile_n, K1p, Hp, w1_single)
    vmem_limit = min(max(int(vmem_need * 1.5) + (1 << 20), 16 << 20), 64 << 20)

    cost = pl.CostEstimate(
        flops=2 * Bp * (K1p * Hp * n_split + Hp * N2p),
        transcendentals=Bp * Hp * n_split,
        bytes_accessed=(Bp * K1p * 2            # x in (bf16)
                        + K1p * Hp * 2          # W1 (bf16)
                        + Hp * N2p * 2 * n_i    # W2 streamed once per M tile
                        + Bp * N2p * 4),        # out (f32)
    )

    out = pl.pallas_call(
        _fused_mlp2_kernel,
        out_shape=jax.ShapeDtypeStruct((Bp, N2p), jnp.float32),
        grid_spec=pltpu.PrefetchScalarGridSpec(
            num_scalar_prefetch=0,
            grid=(n_split, n_i, njps),
            in_specs=[
                pl.BlockSpec((tile_m, K1p), lambda c, i, j: (i, 0)),       # x row tile
                pl.BlockSpec((K1p, Hp), lambda c, i, j: (0, 0), **w1_kw),  # W1 whole
                pl.BlockSpec((1, Hp), lambda c, i, j: (0, 0), **w1_kw),    # b1 whole
                pl.BlockSpec((Hp, tile_n),
                             lambda c, i, j: (0, c * njps + j)),           # W2 slab
                pl.BlockSpec((1, tile_n),
                             lambda c, i, j: (0, c * njps + j)),           # b2 slab
            ],
            out_specs=pl.BlockSpec((tile_m, tile_n),
                                   lambda c, i, j: (i, c * njps + j)),
            scratch_shapes=[pltpu.VMEM((tile_m, Hp), jnp.bfloat16)],
        ),
        compiler_params=pltpu.CompilerParams(
            dimension_semantics=("parallel", "parallel", "arbitrary"),
            vmem_limit_bytes=vmem_limit),
        cost_estimate=cost,
    )(x_p, w1_p, b1_p, w2_p, b2_p)

    return out[:B, :n_out]


# -----------------------------------------------------------------------------
# Module mirrors
# -----------------------------------------------------------------------------
class MLPPallas:
    """Mirror of the PyTorch MLP((d_in, d_hidden, d_out)) used by
    ClipCaptionModel (Linear -> Tanh -> Linear), fused into one Pallas kernel.

    Weights are cast to bf16 and zero-padded to TPU tile multiples ONCE here,
    so the per-call jitted forward only pads the activation.
    """

    def __init__(self, sizes, bias=True, key=jax.random.PRNGKey(0)):
        assert len(sizes) == 3, (
            "ClipCaptionModel's MLP projector always has exactly 2 Linear "
            "layers (3 sizes); got %r" % (sizes,))
        # TODO(synk): generalize the fused kernel to >2 Linear layers if needed.
        self.sizes = tuple(sizes)
        K1, H, N2 = self.sizes

        params = []
        for i in range(2):
            fan_in, fan_out = sizes[i], sizes[i + 1]
            key, kw, kb = jax.random.split(key, 3)
            bound = 1.0 / (fan_in ** 0.5)
            # torch.nn.Linear default init (uniform), stored as (in, out).
            w = jax.random.uniform(kw, (fan_in, fan_out), jnp.float32,
                                   minval=-bound, maxval=bound)
            if bias:
                b = jax.random.uniform(kb, (fan_out,), jnp.float32,
                                       minval=-bound, maxval=bound)
            else:
                b = jnp.zeros((fan_out,), jnp.float32)
            params.append((w.astype(jnp.bfloat16), b.astype(jnp.float32)))
        (self.w1, self.b1), (self.w2, self.b2) = params

        # Pre-padded weights (never repadded per forward call).
        # TODO(synk): int8 (v5e/v6e) / fp8 (v7x) weight quantization would halve
        # the memory-bound W2 stream; kept bf16 here for numerical fidelity.
        K1p, Hp, N2p = _round_up(K1, 128), _round_up(H, 128), _round_up(N2, 128)
        self.w1_p = jnp.pad(self.w1, ((0, K1p - K1), (0, Hp - H)))
        self.b1_p = jnp.pad(self.b1, (0, Hp - H)).reshape(1, Hp)
        self.w2_p = jnp.pad(self.w2, ((0, Hp - H), (0, N2p - N2)))
        self.b2_p = jnp.pad(self.b2, (0, N2p - N2)).reshape(1, N2p)
        self.n_out = N2

    def __call__(self, x):
        return mlp2_forward_padded(x, self.w1_p, self.b1_p, self.w2_p,
                                   self.b2_p, n_out=self.n_out)


class ClipProjectPallas:
    """The clip_project head of ClipCaptionModel (MLP branch, prefix_length<=10),
    returning (B, prefix_length, gpt_embedding_size) prefix projections.

    # TODO(synk): GPT2LMHeadModel (pretrained wte embedding + transformer) has no
    # clean in-script Pallas equivalent; only the clip_project projector is
    # implemented here.
    """

    def __init__(self, prefix_length, prefix_size, gpt_embedding_size,
                 key=jax.random.PRNGKey(0)):
        self.prefix_length = prefix_length
        self.gpt_embedding_size = gpt_embedding_size
        sizes = (prefix_size,
                 gpt_embedding_size * prefix_length // 2,
                 gpt_embedding_size * prefix_length)
        self.mlp = MLPPallas(sizes, key=key)

    def __call__(self, prefix):
        out = self.mlp(prefix)
        return out.reshape(-1, self.prefix_length, self.gpt_embedding_size)


# -----------------------------------------------------------------------------
# Pure-JAX reference (same bf16-weight / f32-accumulate math)
# -----------------------------------------------------------------------------
def _reference_forward(x, w1, b1, w2, b2):
    xb = x.astype(jnp.bfloat16)
    h = jnp.dot(xb, w1, preferred_element_type=jnp.float32) + b1.reshape(1, -1)
    h = jnp.tanh(h).astype(jnp.bfloat16)
    o = jnp.dot(h, w2, preferred_element_type=jnp.float32) + b2.reshape(1, -1)
    return o


if __name__ == "__main__":
    key = jax.random.PRNGKey(0)
    k_in, k_in2, k_params = jax.random.split(key, 3)

    # Small shapes consistent with ClipCaptionModel's MLP branch:
    # prefix_size=256, gpt_embedding_size=48, prefix_length=6
    #   -> MLP sizes (256, 48*6//2=144, 48*6=288); batch of 16 CLIP embeddings.
    prefix_length = 6
    prefix_size = 256
    gpt_embedding_size = 48
    batch = 16

    proj = ClipProjectPallas(prefix_length, prefix_size, gpt_embedding_size,
                             key=k_params)

    # Case 1: aligned batch.
    x = jax.random.normal(k_in, (batch, prefix_size), dtype=jnp.float32)
    prefix_projections = jax.block_until_ready(proj(x))
    assert prefix_projections.shape == (batch, prefix_length,
                                        gpt_embedding_size), prefix_projections.shape
    flat = prefix_projections.reshape(batch, prefix_length * gpt_embedding_size)
    ref = _reference_forward(x, proj.mlp.w1, proj.mlp.b1,
                             proj.mlp.w2, proj.mlp.b2)
    max_err = float(jnp.max(jnp.abs(flat - ref)))
    assert jnp.allclose(flat, ref, atol=1e-2, rtol=1e-2), max_err

    # Case 2: ragged batch (exercises batch padding path).
    batch2 = 3
    x2 = jax.random.normal(k_in2, (batch2, prefix_size), dtype=jnp.float32)
    out2 = jax.block_until_ready(proj(x2))
    assert out2.shape == (batch2, prefix_length, gpt_embedding_size), out2.shape
    flat2 = out2.reshape(batch2, prefix_length * gpt_embedding_size)
    ref2 = _reference_forward(x2, proj.mlp.w1, proj.mlp.b1,
                              proj.mlp.w2, proj.mlp.b2)
    max_err2 = float(jnp.max(jnp.abs(flat2 - ref2)))
    assert jnp.allclose(flat2, ref2, atol=1e-2, rtol=1e-2), max_err2

    print("KERNEL_OK")
</pallas_src>

<mosaic_0001>
module attributes {stable_mosaic.version = 11 : i64} {
  func.func @_fused_mlp2_kernel(%arg0: i32, %arg1: i32, %arg2: i32, %arg3: memref<16x256xbf16, #tpu.memory_space<vmem>>, %arg4: memref<256x256xbf16, #tpu.memory_space<vmem>>, %arg5: memref<1x256xf32, #tpu.memory_space<vmem>>, %arg6: memref<256x384xbf16, #tpu.memory_space<vmem>>, %arg7: memref<1x384xf32, #tpu.memory_space<vmem>>, %arg8: memref<16x384xf32, #tpu.memory_space<vmem>>, %arg9: memref<16x256xbf16, #tpu.memory_space<vmem>>) attributes {dimension_semantics = [#tpu.dimension_semantics<parallel>, #tpu.dimension_semantics<parallel>, #tpu.dimension_semantics<arbitrary>], iteration_bounds = array<i64: 1, 1, 1>, scalar_prefetch = 0 : i64, scratch_operands = 1 : i64, tpu.core_type = #tpu.core_type<tc>, window_params = [{transform_indices = @transform_0, window_bounds = array<i64: 16, 256>}, {pipeline_mode = #tpu.pipeline_mode<synchronous>, transform_indices = @transform_1, window_bounds = array<i64: 256, 256>}, {pipeline_mode = #tpu.pipeline_mode<synchronous>, transform_indices = @transform_2, window_bounds = array<i64: 1, 256>}, {transform_indices = @transform_3, window_bounds = array<i64: 256, 384>}, {transform_indices = @transform_4, window_bounds = array<i64: 1, 384>}, {transform_indices = @transform_5, window_bounds = array<i64: 16, 384>}]} {
    %c0_i32 = arith.constant 0 : i32
    %0 = arith.cmpi eq, %arg2, %c0_i32 : i32
    %1 = arith.extui %0 : i1 to i32
    %c0_i32_0 = arith.constant 0 : i32
    %2 = arith.cmpi ne, %1, %c0_i32_0 : i32
    scf.if %2 {
      %c0_8 = arith.constant 0 : index
      %c0_9 = arith.constant 0 : index
      %10 = vector.load %arg3[%c0_8, %c0_9] : memref<16x256xbf16, #tpu.memory_space<vmem>>, vector<16x256xbf16>
      %c0_10 = arith.constant 0 : index
      %c0_11 = arith.constant 0 : index
      %11 = vector.load %arg4[%c0_10, %c0_11] : memref<256x256xbf16, #tpu.memory_space<vmem>>, vector<256x256xbf16>
      %cst_12 = arith.constant dense<0.000000e+00> : vector<16x256xf32>
      %12 = tpu.matmul %10, %11, %cst_12 {dimension_numbers = #tpu.dot_dimension_numbers<[1], [0], [0], [1], [0, 0, 1, 1], [], []>} : vector<16x256xbf16>, vector<256x256xbf16>, vector<16x256xf32> -> vector<16x256xf32>
      %c0_13 = arith.constant 0 : index
      %c0_14 = arith.constant 0 : index
      %13 = vector.load %arg5[%c0_13, %c0_14] : memref<1x256xf32, #tpu.memory_space<vmem>>, vector<1x256xf32>
      %14 = vector.broadcast %13 : vector<1x256xf32> to vector<16x256xf32>
      %15 = arith.addf %12, %14 : vector<16x256xf32>
      %16 = math.tanh %15 : vector<16x256xf32>
      %17 = arith.truncf %16 : vector<16x256xf32> to vector<16x256xbf16>
      %c0_15 = arith.constant 0 : index
      %c0_16 = arith.constant 0 : index
      %18 = vector.load %arg9[%c0_15, %c0_16] : memref<16x256xbf16, #tpu.memory_space<vmem>>, vector<16x256xbf16>
      tpu.vector_store %arg9[%c0_15, %c0_16], %17 {strides = array<i32>} : memref<16x256xbf16, #tpu.memory_space<vmem>>, vector<16x256xbf16>,
    } else {
    }
    %c0 = arith.constant 0 : index
    %c0_1 = arith.constant 0 : index
    %3 = vector.load %arg9[%c0, %c0_1] : memref<16x256xbf16, #tpu.memory_space<vmem>>, vector<16x256xbf16>
    %c0_2 = arith.constant 0 : index
    %c0_3 = arith.constant 0 : index
    %4 = vector.load %arg6[%c0_2, %c0_3] : memref<256x384xbf16, #tpu.memory_space<vmem>>, vector<256x384xbf16>
    %cst = arith.constant dense<0.000000e+00> : vector<16x384xf32>
    %5 = tpu.matmul %3, %4, %cst {dimension_numbers = #tpu.dot_dimension_numbers<[1], [0], [0], [1], [0, 0, 1, 1], [], []>} : vector<16x256xbf16>, vector<256x384xbf16>, vector<16x384xf32> -> vector<16x384xf32>
    %c0_4 = arith.constant 0 : index
    %c0_5 = arith.constant 0 : index
    %6 = vector.load %arg7[%c0_4, %c0_5] : memref<1x384xf32, #tpu.memory_space<vmem>>, vector<1x384xf32>
    %7 = vector.broadcast %6 : vector<1x384xf32> to vector<16x384xf32>
    %8 = arith.addf %5, %7 : vector<16x384xf32>
    %c0_6 = arith.constant 0 : index
    %c0_7 = arith.constant 0 : index
    %9 = vector.load %arg8[%c0_6, %c0_7] : memref<16x384xf32, #tpu.memory_space<vmem>>, vector<16x384xf32>
    tpu.vector_store %arg8[%c0_6, %c0_7], %8 {strides = array<i32>} : memref<16x384xf32, #tpu.memory_space<vmem>>, vector<16x384xf32>,
    return
  }
  func.func @transform_0(%arg0: i32, %arg1: i32, %arg2: i32) -> (i32, i32) {
    %c0_i32 = arith.constant 0 : i32
    %c0_i32_0 = arith.constant 0 : i32
    return %arg1, %c0_i32 : i32, i32
  }
  func.func @transform_1(%arg0: i32, %arg1: i32, %arg2: i32) -> (i32, i32) {
    %c0_i32 = arith.constant 0 : i32
    %c0_i32_0 = arith.constant 0 : i32
    %c0_i32_1 = arith.constant 0 : i32
    return %c0_i32, %c0_i32_0 : i32, i32
  }
  func.func @transform_2(%arg0: i32, %arg1: i32, %arg2: i32) -> (i32, i32) {
    %c0_i32 = arith.constant 0 : i32
    %c0_i32_0 = arith.constant 0 : i32
    %c0_i32_1 = arith.constant 0 : i32
    return %c0_i32, %c0_i32_0 : i32, i32
  }
  func.func @transform_3(%arg0: i32, %arg1: i32, %arg2: i32) -> (i32, i32) {
    %c1_i32 = arith.constant 1 : i32
    %0 = arith.muli %arg0, %c1_i32 : i32
    %1 = arith.addi %0, %arg2 : i32
    %c0_i32 = arith.constant 0 : i32
    %c0_i32_0 = arith.constant 0 : i32
    return %c0_i32, %1 : i32, i32
  }
  func.func @transform_4(%arg0: i32, %arg1: i32, %arg2: i32) -> (i32, i32) {
    %c1_i32 = arith.constant 1 : i32
    %0 = arith.muli %arg0, %c1_i32 : i32
    %1 = arith.addi %0, %arg2 : i32
    %c0_i32 = arith.constant 0 : i32
    %c0_i32_0 = arith.constant 0 : i32
    return %c0_i32, %1 : i32, i32
  }
  func.func @transform_5(%arg0: i32, %arg1: i32, %arg2: i32) -> (i32, i32) {
    %c1_i32 = arith.constant 1 : i32
    %0 = arith.muli %arg0, %c1_i32 : i32
    %1 = arith.addi %0, %arg2 : i32
    %c0_i32 = arith.constant 0 : i32
    return %arg1, %1 : i32, i32
  }
}

</mosaic_0001>

<llo_original>
// kernel: mlp2_forward_padded.1
$region0: #{mlp2_forward_padded.1}
  #allocation0 [shape = 'u32[]', space=smem, size = 0x4, offset = 0x4, fixed_abs, tag = 'smem constant byte address 0x4 - core index']
  #allocation1 [shape = 'u32[144,128]{1,0:T(1,128)}', space=vmem, size = 0x12000, scoped, tag = 'internal scratch']
  #allocation2 [shape = 'bf16[16,256]{1,0:T(16,128)(2,1)}', space=vmem, size = 0x2000, scoped, tag = 'scratch operand']
  %s0 = inlined_call_operand.vmem [shape: bf16[16,256], index: 0, kind: input, shape index: {}]
  %s1 = inlined_call_operand.hbm [shape: bf16[256,256], index: 1, kind: input, shape index: {}]
  %s2 = inlined_call_operand.vmem [shape: f32[1,256], index: 2, kind: input, shape index: {}]
  %s3 = inlined_call_operand.hbm [shape: bf16[256,384], index: 3, kind: input, shape index: {}]
  %s4 = inlined_call_operand.vmem [shape: f32[1,384], index: 4, kind: input, shape index: {}]
  %s5 = inlined_call_operand.hbm [shape: f32[16,384], index: 5, kind: output, shape index: {}]
  %s6 = sld [smem:[#allocation0]]
  $region42: #{mlp2_forward_padded.1} parent=0
    _
  %s8 = ssub.s32 1, %s6
  %s9 = scalar_select 0, %s8, %s6
  $region1: #{mlp2_forward_padded.1} parent=0
    #allocation3 [shape = 'u8[131072]{0}', space=vmem, size = 0x20000, scoped, tag = 'input window, operand 1, single buffered']
    #allocation4 [shape = 's32[1]{0}', space=sflag, size = 0x4, scoped, tag = 'scoped memory for mlp2_forward_padded.1']
    #allocation5 [shape = 's32[1]{0}', space=sflag, size = 0x4, scoped, tag = 'scoped memory for mlp2_forward_padded.1']
    #allocation6 [shape = 'u8[196608]{0}', space=vmem, size = 0x30000, scoped, tag = 'input window, operand 3, single buffered']
    #allocation7 [shape = 's32[1]{0}', space=sflag, size = 0x4, scoped, tag = 'scoped memory for mlp2_forward_padded.1']
    #allocation8 [shape = 'u8[24576]{0}', space=vmem, size = 0x6000, scoped, tag = 'output window, operand 0, single buffered']
    %10 = vsyncpa [#allocation4], 0
    %11 = vsyncpa [#allocation7], 0
    %12 = vsyncpa [#allocation5], 0
    // Predicated region
    $region2: #{mlp2_forward_padded.1} parent=1 // pred_check
      _
    $region3: #{mlp2_forward_padded.1} parent=1 // pred_check_branch
      %14 = sbr.rel (0) target = $region5
    $region4: #{mlp2_forward_padded.1} parent=1 // pred_region
      _
    $region5: #{mlp2_forward_padded.1} parent=1 // pred_fallthru
      _
    // Predicated region
    $region6: #{mlp2_forward_padded.1} parent=1 // pred_check
      _
    $region7: #{mlp2_forward_padded.1} parent=1 // pred_check_branch
      %16 = sbr.rel (0) target = $region9
    $region8: #{mlp2_forward_padded.1} parent=1 // pred_region
      %s18 = ssub.s32 4096, 4096
      %19 = vsyncadd [#allocation4], %s18
      %s20 = sshll.u32 [#allocation3], 4
      %s21 = int_to_ptr.vmem [resolvable:$true] %s20
      %26 = dma.hbm_to_vmem [thread:$0]  %s1, 4096, %s21, [#allocation4], 128, 128, 8
    $region9: #{mlp2_forward_padded.1} parent=1 // pred_fallthru
      _
    // Predicated region
    $region10: #{mlp2_forward_padded.1} parent=1 // pred_check
      _
    $region11: #{mlp2_forward_padded.1} parent=1 // pred_check_branch
      %28 = sbr.rel (0) target = $region13
    $region12: #{mlp2_forward_padded.1} parent=1 // pred_region
      _
    $region13: #{mlp2_forward_padded.1} parent=1 // pred_fallthru
      _
    // Predicated region
    $region14: #{mlp2_forward_padded.1} parent=1 // pred_check
      _
    $region15: #{mlp2_forward_padded.1} parent=1 // pred_check_branch
      %30 = sbr.rel (0) target = $region17
    $region16: #{mlp2_forward_padded.1} parent=1 // pred_region
      %s31 = sadd.s32 0, 0
      %s32 = smul.u32 3, %s31
      %s34 = ssub.s32 6144, 6144
      %35 = vsyncadd [#allocation7], %s34
      %s36 = smul.addr %s32, 64
      %s37 = scalar_lea.hbm %s3, %s36
      %s38 = sshll.u32 [#allocation6], 4
      %s39 = int_to_ptr.vmem [resolvable:$true] %s38
      %44 = dma.hbm_to_vmem [thread:$0]  %s37, 6144, %s39, [#allocation7], 192, 192, 12
    $region17: #{mlp2_forward_padded.1} parent=1 // pred_fallthru
      _
    // Predicated region
    $region18: #{mlp2_forward_padded.1} parent=1 // pred_check
      _
    $region19: #{mlp2_forward_padded.1} parent=1 // pred_check_branch
      %46 = sbr.rel (0) target = $region21
    $region20: #{mlp2_forward_padded.1} parent=1 // pred_region
      %s47 = sadd.s32 0, 0
      %s48 = smul.u32 3, %s47
      %p49 = scmp.lt.s32.totalorder %s48, 2
      %s50 = scalar_select %p49, %s48, 2
      %s51 = scalar_lea.vmem %s4, %s50
      %s52 = sadd.s32 0, 0
      %s53 = smul.u32 3, %s52
    $region21: #{mlp2_forward_padded.1} parent=1 // pred_fallthru
      _
    // Predicated region
    $region22: #{mlp2_forward_padded.1} parent=1 // pred_check
      _
    $region23: #{mlp2_forward_padded.1} parent=1 // pred_check_branch
      %55 = sbr.rel (0) target = $region25
    $region24: #{mlp2_forward_padded.1} parent=1 // pred_region
      %56 = dma.done [#allocation4], 4096
    $region25: #{mlp2_forward_padded.1} parent=1 // pred_fallthru
      _
    // Predicated region
    $region26: #{mlp2_forward_padded.1} parent=1 // pred_check
      _
    $region27: #{mlp2_forward_padded.1} parent=1 // pred_check_branch
      %58 = sbr.rel (0) target = $region29
    $region28: #{mlp2_forward_padded.1} parent=1 // pred_region
      %59 = dma.done [#allocation7], 6144
    $region29: #{mlp2_forward_padded.1} parent=1 // pred_fallthru
      _
    %s60 = sadd.s32 0, 0
    %s61 = smul.u32 3, %s60
    %p62 = scmp.lt.s32.totalorder %s61, 2
    %s63 = scalar_select %p62, %s61, 2
    %s64 = scalar_lea.vmem %s4, %s63
    %s65 = sadd.s32 0, 0
    %s66 = smul.u32 3, %s65
    %s67 = sadd.s32 0, 0
    %s68 = smul.u32 3, %s67
    %p69 = scmp.lt.s32.totalorder %s68, 2
    %s70 = scalar_select %p69, %s68, 2
    %s71 = scalar_lea.vmem %s4, %s70
    %s72 = sadd.s32 0, 0
    %s73 = smul.u32 3, %s72
    %s74 = sadd.s32 0, 0
    %s75 = smul.u32 3, %s74
    %p77 = scmp.eq.s32.totalorder 0, 0
    // Predicated region
    $region30: #{mlp2_forward_padded.1} parent=1 // pred_check
      %p78 = pneg %p77
    $region31: #{mlp2_forward_padded.1} parent=1 // pred_check_branch
      %80 = sbr.rel (%p78) target = $region33
    $region32: #{mlp2_forward_padded.1} parent=1 // pred_region
      %v81 = vld [vmem:[%s0] sm:$0xff]
      %v82 = vld [vmem:[%s0 + $0x8] sm:$0xff]
      %v83 = vld [vmem:[#allocation3] sm:$0xff]
      %v84 = vld [vmem:[#allocation3 + $0x8] sm:$0xff]
      %v85 = vld [vmem:[#allocation3 + $0x10] sm:$0xff]
      %v86 = vld [vmem:[#allocation3 + $0x18] sm:$0xff]
      %v87 = vld [vmem:[#allocation3 + $0x20] sm:$0xff]
      %v88 = vld [vmem:[#allocation3 + $0x28] sm:$0xff]
      %v89 = vld [vmem:[#allocation3 + $0x30] sm:$0xff]
      %v90 = vld [vmem:[#allocation3 + $0x38] sm:$0xff]
      %v91 = vld [vmem:[#allocation3 + $0x40] sm:$0xff]
      %v92 = vld [vmem:[#allocation3 + $0x48] sm:$0xff]
      %v93 = vld [vmem:[#allocation3 + $0x50] sm:$0xff]
      %v94 = vld [vmem:[#allocation3 + $0x58] sm:$0xff]
      %v95 = vld [vmem:[#allocation3 + $0x60] sm:$0xff]
      %v96 = vld [vmem:[#allocation3 + $0x68] sm:$0xff]
      %v97 = vld [vmem:[#allocation3 + $0x70] sm:$0xff]
      %v98 = vld [vmem:[#allocation3 + $0x78] sm:$0xff]
      %v99 = vld [vmem:[#allocation3 + $0x80] sm:$0xff]
      %v100 = vld [vmem:[#allocation3 + $0x88] sm:$0xff]
      %v101 = vld [vmem:[#allocation3 + $0x90] sm:$0xff]
      %v102 = vld [vmem:[#allocation3 + $0x98] sm:$0xff]
      %v103 = vld [vmem:[#allocation3 + $0xa0] sm:$0xff]
      %v104 = vld [vmem:[#allocation3 + $0xa8] sm:$0xff]
      %v105 = vld [vmem:[#allocation3 + $0xb0] sm:$0xff]
      %v106 = vld [vmem:[#allocation3 + $0xb8] sm:$0xff]
      %v107 = vld [vmem:[#allocation3 + $0xc0] sm:$0xff]
      %v108 = vld [vmem:[#allocation3 + $0xc8] sm:$0xff]
      %v109 = vld [vmem:[#allocation3 + $0xd0] sm:$0xff]
      %v110 = vld [vmem:[#allocation3 + $0xd8] sm:$0xff]
      %v111 = vld [vmem:[#allocation3 + $0xe0] sm:$0xff]
      %v112 = vld [vmem:[#allocation3 + $0xe8] sm:$0xff]
      %v113 = vld [vmem:[#allocation3 + $0xf0] sm:$0xff]
      %v114 = vld [vmem:[#allocation3 + $0xf8] sm:$0xff]
      %v115 = vld [vmem:[%s2] sm:$0x3]
      %v117 = vlaneseq
      %v118 = vshrl.u32 %v117, 7
      %v119 = vsub.s32 0, %v118
      %v120 = vrot.slane %v115, %v119
      %v121 = vlaneseq
      %v122 = vshrl.u32 %v121, 7
      %v123 = vsub.s32 1, %v122
      %v124 = vrot.slane %v115, %v123
      %v129 = vunpack.c.l.b16 %v81
      %v130 = vunpack.c.h.b16 %v81
      %v131 = vunpack.c.l.b16 %v82
      %v132 = vunpack.c.h.b16 %v82
      %v133 = vpack.c.b16 %v131, %v129
      %v134 = vpack.c.b16 %v132, %v130
      %v169 = vunpack.c.l.b16 %v83
      %v170 = vunpack.c.h.b16 %v83
      %v171 = vunpack.c.l.b16 %v84
      %v172 = vunpack.c.h.b16 %v84
      %v173 = vunpack.c.l.b16 %v85
      %v174 = vunpack.c.h.b16 %v85
      %v175 = vunpack.c.l.b16 %v86
      %v176 = vunpack.c.h.b16 %v86
      %v177 = vunpack.c.l.b16 %v87
      %v178 = vunpack.c.h.b16 %v87
      %v179 = vunpack.c.l.b16 %v88
      %v180 = vunpack.c.h.b16 %v88
      %v181 = vunpack.c.l.b16 %v89
      %v182 = vunpack.c.h.b16 %v89
      %v183 = vunpack.c.l.b16 %v90
      %v184 = vunpack.c.h.b16 %v90
      %v185 = vunpack.c.l.b16 %v91
      %v186 = vunpack.c.h.b16 %v91
      %v187 = vunpack.c.l.b16 %v92
      %v188 = vunpack.c.h.b16 %v92
      %v189 = vunpack.c.l.b16 %v93
      %v190 = vunpack.c.h.b16 %v93
      %v191 = vunpack.c.l.b16 %v94
      %v192 = vunpack.c.h.b16 %v94
      %v193 = vunpack.c.l.b16 %v95
      %v194 = vunpack.c.h.b16 %v95
      %v195 = vunpack.c.l.b16 %v96
      %v196 = vunpack.c.h.b16 %v96
      %v197 = vunpack.c.l.b16 %v97
      %v198 = vunpack.c.h.b16 %v97
      %v199 = vunpack.c.l.b16 %v98
      %v200 = vunpack.c.h.b16 %v98
      %v201 = vunpack.c.l.b16 %v99
      %v202 = vunpack.c.h.b16 %v99
      %v203 = vunpack.c.l.b16 %v100
      %v204 = vunpack.c.h.b16 %v100
      %v205 = vunpack.c.l.b16 %v101
      %v206 = vunpack.c.h.b16 %v101
      %v207 = vunpack.c.l.b16 %v102
      %v208 = vunpack.c.h.b16 %v102
      %v209 = vunpack.c.l.b16 %v103
      %v210 = vunpack.c.h.b16 %v103
      %v211 = vunpack.c.l.b16 %v104
      %v212 = vunpack.c.h.b16 %v104
      %v213 = vunpack.c.l.b16 %v105
      %v214 = vunpack.c.h.b16 %v105
      %v215 = vunpack.c.l.b16 %v106
      %v216 = vunpack.c.h.b16 %v106
      %v217 = vunpack.c.l.b16 %v107
      %v218 = vunpack.c.h.b16 %v107
      %v219 = vunpack.c.l.b16 %v108
      %v220 = vunpack.c.h.b16 %v108
      %v221 = vunpack.c.l.b16 %v109
      %v222 = vunpack.c.h.b16 %v109
      %v223 = vunpack.c.l.b16 %v110
      %v224 = vunpack.c.h.b16 %v110
      %v225 = vunpack.c.l.b16 %v111
      %v226 = vunpack.c.h.b16 %v111
      %v227 = vunpack.c.l.b16 %v112
      %v228 = vunpack.c.h.b16 %v112
      %v229 = vunpack.c.l.b16 %v113
      %v230 = vunpack.c.h.b16 %v113
      %v231 = vunpack.c.l.b16 %v114
      %v232 = vunpack.c.h.b16 %v114
      %v233 = vpack.c.b16 %v171, %v169
      %v234 = vpack.c.b16 %v172, %v170
      %v235 = vpack.c.b16 %v175, %v173
      %v236 = vpack.c.b16 %v176, %v174
      %v237 = vpack.c.b16 %v179, %v177
      %v238 = vpack.c.b16 %v180, %v178
      %v239 = vpack.c.b16 %v183, %v181
      %v240 = vpack.c.b16 %v184, %v182
      %v241 = vpack.c.b16 %v187, %v185
      %v242 = vpack.c.b16 %v188, %v186
      %v243 = vpack.c.b16 %v191, %v189
      %v244 = vpack.c.b16 %v192, %v190
      %v245 = vpack.c.b16 %v195, %v193
      %v246 = vpack.c.b16 %v196, %v194
      %v247 = vpack.c.b16 %v199, %v197
      %v248 = vpack.c.b16 %v200, %v198
      %v249 = vpack.c.b16 %v203, %v201
      %v250 = vpack.c.b16 %v204, %v202
      %v251 = vpack.c.b16 %v207, %v205
      %v252 = vpack.c.b16 %v208, %v206
      %v253 = vpack.c.b16 %v211, %v209
      %v254 = vpack.c.b16 %v212, %v210
      %v255 = vpack.c.b16 %v215, %v213
      %v256 = vpack.c.b16 %v216, %v214
      %v257 = vpack.c.b16 %v219, %v217
      %v258 = vpack.c.b16 %v220, %v218
      %v259 = vpack.c.b16 %v223, %v221
      %v260 = vpack.c.b16 %v224, %v222
      %v261 = vpack.c.b16 %v227, %v225
      %v262 = vpack.c.b16 %v228, %v226
      %v263 = vpack.c.b16 %v231, %v229
      %v264 = vpack.c.b16 %v232, %v230
      %297 = vmatprep.subr.bf16.mxu0 %v234
      %298 = vmatpush1.bf16.msra.mxu0 %v233
      %299 = vmatprep.subr.bf16.mxu0 %v236
      %300 = vmatpush1.bf16.msra.mxu0 %v235
      %301 = vmatprep.subr.bf16.mxu0 %v238
      %302 = vmatpush1.bf16.msra.mxu0 %v237
      %303 = vmatprep.subr.bf16.mxu0 %v240
      %304 = vmatpush1.bf16.msra.mxu0 %v239
      %305 = vmatprep.subr.bf16.mxu0 %v242
      %306 = vmatpush1.bf16.msra.mxu0 %v241
      %307 = vmatprep.subr.bf16.mxu0 %v244
      %308 = vmatpush1.bf16.msra.mxu0 %v243
      %309 = vmatprep.subr.bf16.mxu0 %v246
      %310 = vmatpush1.bf16.msra.mxu0 %v245
      %311 = vmatprep.subr.bf16.mxu0 %v248
      %312 = vmatpush1.bf16.msra.mxu0 %v247
      %313 = vmatprep.subr.bf16.mxu0 %v250
      %314 = vmatpush1.bf16.msra.mxu0 %v249
      %315 = vmatprep.subr.bf16.mxu0 %v252
      %316 = vmatpush1.bf16.msra.mxu0 %v251
      %317 = vmatprep.subr.bf16.mxu0 %v254
      %318 = vmatpush1.bf16.msra.mxu0 %v253
      %319 = vmatprep.subr.bf16.mxu0 %v256
      %320 = vmatpush1.bf16.msra.mxu0 %v255
      %321 = vmatprep.subr.bf16.mxu0 %v258
      %322 = vmatpush1.bf16.msra.mxu0 %v257
      %323 = vmatprep.subr.bf16.mxu0 %v260
      %324 = vmatpush1.bf16.msra.mxu0 %v259
      %325 = vmatprep.subr.bf16.mxu0 %v262
      %326 = vmatpush1.bf16.msra.mxu0 %v261
      %327 = vmatprep.subr.bf16.mxu0 %v264
      %328 = vmatpush1.bf16.msra.mxu0 %v263
      %329 = vmatprep.mubr.bf16.mxu0 %v134
      %330 = vmatmul.mubr.bf16.gmra.mrb[0].mxu0 %v133
      %v331 = vpop.f32.mrb[0].mxu0
      %v332 = vadd.f32 %v120, %v331
      %v333 = vpop.f32.mrb[0].mxu0
      %v334 = vadd.f32 %v124, %v333
      %v335 = vpop.f32.mrb[0].mxu0
      %v336 = vadd.f32 %v120, %v335
      %v337 = vpop.f32.mrb[0].mxu0
      %v338 = vadd.f32 %v124, %v337
      %339 = vdwg.mxu0
      %v340 = vtanh.pop %v332
      %v341 = vtanh.pop %v334
      %v342 = vtanh.pop %v336
      %v343 = vtanh.pop %v338
      %v344 = vpack.c.bf16 %v342, %v340
      %v345 = vpack.c.bf16 %v343, %v341
      %346 = vst [vmem:[#allocation2] sm:$0xff] %v344
      %347 = vst [vmem:[#allocation2 + $0x8] sm:$0xff] %v345
    $region33: #{mlp2_forward_padded.1} parent=1 // pred_fallthru
      _
    %v348 = vld [vmem:[#allocation2] sm:$0xff]
    %v349 = vld [vmem:[#allocation2 + $0x8] sm:$0xff]
    %v350 = vld [vmem:[#allocation6] sm:$0xff]
    %v351 = vld [vmem:[#allocation6 + $0x8] sm:$0xf]
    %v352 = vld [vmem:[#allocation6 + $0xc] sm:$0xff]
    %v353 = vld [vmem:[#allocation6 + $0x14] sm:$0xf]
    %v354 = vld [vmem:[#allocation6 + $0x18] sm:$0xff]
    %v355 = vld [vmem:[#allocation6 + $0x20] sm:$0xf]
    %v356 = vld [vmem:[#allocation6 + $0x24] sm:$0xff]
    %v357 = vld [vmem:[#allocation6 + $0x2c] sm:$0xf]
    %v358 = vld [vmem:[#allocation6 + $0x30] sm:$0xff]
    %v359 = vld [vmem:[#allocation6 + $0x38] sm:$0xf]
    %v360 = vld [vmem:[#allocation6 + $0x3c] sm:$0xff]
    %v361 = vld [vmem:[#allocation6 + $0x44] sm:$0xf]
    %v362 = vld [vmem:[#allocation6 + $0x48] sm:$0xff]
    %v363 = vld [vmem:[#allocation6 + $0x50] sm:$0xf]
    %v364 = vld [vmem:[#allocation6 + $0x54] sm:$0xff]
    %v365 = vld [vmem:[#allocation6 + $0x5c] sm:$0xf]
    %v366 = vld [vmem:[#allocation6 + $0x60] sm:$0xff]
    %v367 = vld [vmem:[#allocation6 + $0x68] sm:$0xf]
    %v368 = vld [vmem:[#allocation6 + $0x6c] sm:$0xff]
    %v369 = vld [vmem:[#allocation6 + $0x74] sm:$0xf]
    %v370 = vld [vmem:[#allocation6 + $0x78] sm:$0xff]
    %v371 = vld [vmem:[#allocation6 + $0x80] sm:$0xf]
    %v372 = vld [vmem:[#allocation6 + $0x84] sm:$0xff]
    %v373 = vld [vmem:[#allocation6 + $0x8c] sm:$0xf]
    %v374 = vld [vmem:[#allocation6 + $0x90] sm:$0xff]
    %v375 = vld [vmem:[#allocation6 + $0x98] sm:$0xf]
    %v376 = vld [vmem:[#allocation6 + $0x9c] sm:$0xff]
    %v377 = vld [vmem:[#allocation6 + $0xa4] sm:$0xf]
    %v378 = vld [vmem:[#allocation6 + $0xa8] sm:$0xff]
    %v379 = vld [vmem:[#allocation6 + $0xb0] sm:$0xf]
    %v380 = vld [vmem:[#allocation6 + $0xb4] sm:$0xff]
    %v381 = vld [vmem:[#allocation6 + $0xbc] sm:$0xf]
    %v382 = vld [vmem:[#allocation6 + $0xc0] sm:$0xff]
    %v383 = vld [vmem:[#allocation6 + $0xc8] sm:$0xf]
    %v384 = vld [vmem:[#allocation6 + $0xcc] sm:$0xff]
    %v385 = vld [vmem:[#allocation6 + $0xd4] sm:$0xf]
    %v386 = vld [vmem:[#allocation6 + $0xd8] sm:$0xff]
    %v387 = vld [vmem:[#allocation6 + $0xe0] sm:$0xf]
    %v388 = vld [vmem:[#allocation6 + $0xe4] sm:$0xff]
    %v389 = vld [vmem:[#allocation6 + $0xec] sm:$0xf]
    %v390 = vld [vmem:[#allocation6 + $0xf0] sm:$0xff]
    %v391 = vld [vmem:[#allocation6 + $0xf8] sm:$0xf]
    %v392 = vld [vmem:[#allocation6 + $0xfc] sm:$0xff]
    %v393 = vld [vmem:[#allocation6 + $0x104] sm:$0xf]
    %v394 = vld [vmem:[#allocation6 + $0x108] sm:$0xff]
    %v395 = vld [vmem:[#allocation6 + $0x110] sm:$0xf]
    %v396 = vld [vmem:[#allocation6 + $0x114] sm:$0xff]
    %v397 = vld [vmem:[#allocation6 + $0x11c] sm:$0xf]
    %v398 = vld [vmem:[#allocation6 + $0x120] sm:$0xff]
    %v399 = vld [vmem:[#allocation6 + $0x128] sm:$0xf]
    %v400 = vld [vmem:[#allocation6 + $0x12c] sm:$0xff]
    %v401 = vld [vmem:[#allocation6 + $0x134] sm:$0xf]
    %v402 = vld [vmem:[#allocation6 + $0x138] sm:$0xff]
    %v403 = vld [vmem:[#allocation6 + $0x140] sm:$0xf]
    %v404 = vld [vmem:[#allocation6 + $0x144] sm:$0xff]
    %v405 = vld [vmem:[#allocation6 + $0x14c] sm:$0xf]
    %v406 = vld [vmem:[#allocation6 + $0x150] sm:$0xff]
    %v407 = vld [vmem:[#allocation6 + $0x158] sm:$0xf]
    %v408 = vld [vmem:[#allocation6 + $0x15c] sm:$0xff]
    %v409 = vld [vmem:[#allocation6 + $0x164] sm:$0xf]
    %v410 = vld [vmem:[#allocation6 + $0x168] sm:$0xff]
    %v411 = vld [vmem:[#allocation6 + $0x170] sm:$0xf]
    %v412 = vld [vmem:[#allocation6 + $0x174] sm:$0xff]
    %v413 = vld [vmem:[#allocation6 + $0x17c] sm:$0xf]
    %v414 = vld [vmem:[%s71] sm:$0x7]
    %v416 = vlaneseq
    %v417 = vshrl.u32 %v416, 7
    %v418 = vsub.s32 0, %v417
    %v419 = vrot.slane %v414, %v418
    %v420 = vlaneseq
    %v421 = vshrl.u32 %v420, 7
    %v422 = vsub.s32 1, %v421
    %v423 = vrot.slane %v414, %v422
    %v424 = vlaneseq
    %v425 = vshrl.u32 %v424, 7
    %v426 = vsub.s32 2, %v425
    %v427 = vrot.slane %v414, %v426
    %v495 = vunpack.c.l.b16 %v350
    %v496 = vunpack.c.h.b16 %v350
    %v497 = vunpack.c.l.b16 %v351
    %v498 = vunpack.c.l.b16 %v352
    %v499 = vunpack.c.h.b16 %v352
    %v500 = vunpack.c.l.b16 %v353
    %v501 = vunpack.c.l.b16 %v354
    %v502 = vunpack.c.h.b16 %v354
    %v503 = vunpack.c.l.b16 %v355
    %v504 = vunpack.c.l.b16 %v356
    %v505 = vunpack.c.h.b16 %v356
    %v506 = vunpack.c.l.b16 %v357
    %v507 = vunpack.c.l.b16 %v358
    %v508 = vunpack.c.h.b16 %v358
    %v509 = vunpack.c.l.b16 %v359
    %v510 = vunpack.c.l.b16 %v360
    %v511 = vunpack.c.h.b16 %v360
    %v512 = vunpack.c.l.b16 %v361
    %v513 = vunpack.c.l.b16 %v362
    %v514 = vunpack.c.h.b16 %v362
    %v515 = vunpack.c.l.b16 %v363
    %v516 = vunpack.c.l.b16 %v364
    %v517 = vunpack.c.h.b16 %v364
    %v518 = vunpack.c.l.b16 %v365
    %v519 = vunpack.c.l.b16 %v366
    %v520 = vunpack.c.h.b16 %v366
    %v521 = vunpack.c.l.b16 %v367
    %v522 = vunpack.c.l.b16 %v368
    %v523 = vunpack.c.h.b16 %v368
    %v524 = vunpack.c.l.b16 %v369
    %v525 = vunpack.c.l.b16 %v370
    %v526 = vunpack.c.h.b16 %v370
    %v527 = vunpack.c.l.b16 %v371
    %v528 = vunpack.c.l.b16 %v372
    %v529 = vunpack.c.h.b16 %v372
    %v530 = vunpack.c.l.b16 %v373
    %v531 = vunpack.c.l.b16 %v374
    %v532 = vunpack.c.h.b16 %v374
    %v533 = vunpack.c.l.b16 %v375
    %v534 = vunpack.c.l.b16 %v376
    %v535 = vunpack.c.h.b16 %v376
    %v536 = vunpack.c.l.b16 %v377
    %v537 = vunpack.c.l.b16 %v378
    %v538 = vunpack.c.h.b16 %v378
    %v539 = vunpack.c.l.b16 %v379
    %v540 = vunpack.c.l.b16 %v380
    %v541 = vunpack.c.h.b16 %v380
    %v542 = vunpack.c.l.b16 %v381
    %v543 = vunpack.c.l.b16 %v382
    %v544 = vunpack.c.h.b16 %v382
    %v545 = vunpack.c.l.b16 %v383
    %v546 = vunpack.c.l.b16 %v384
    %v547 = vunpack.c.h.b16 %v384
    %v548 = vunpack.c.l.b16 %v385
    %v549 = vunpack.c.l.b16 %v386
    %v550 = vunpack.c.h.b16 %v386
    %v551 = vunpack.c.l.b16 %v387
    %v552 = vunpack.c.l.b16 %v388
    %v553 = vunpack.c.h.b16 %v388
    %v554 = vunpack.c.l.b16 %v389
    %v555 = vunpack.c.l.b16 %v390
    %v556 = vunpack.c.h.b16 %v390
    %v557 = vunpack.c.l.b16 %v391
    %v558 = vunpack.c.l.b16 %v392
    %v559 = vunpack.c.h.b16 %v392
    %v560 = vunpack.c.l.b16 %v393
    %v561 = vunpack.c.l.b16 %v394
    %v562 = vunpack.c.h.b16 %v394
    %v563 = vunpack.c.l.b16 %v395
    %v564 = vunpack.c.l.b16 %v396
    %v565 = vunpack.c.h.b16 %v396
    %v566 = vunpack.c.l.b16 %v397
    %v567 = vunpack.c.l.b16 %v398
    %v568 = vunpack.c.h.b16 %v398
    %v569 = vunpack.c.l.b16 %v399
    %v570 = vunpack.c.l.b16 %v400
    %v571 = vunpack.c.h.b16 %v400
    %v572 = vunpack.c.l.b16 %v401
    %v573 = vunpack.c.l.b16 %v402
    %v574 = vunpack.c.h.b16 %v402
    %v575 = vunpack.c.l.b16 %v403
    %v576 = vunpack.c.l.b16 %v404
    %v577 = vunpack.c.h.b16 %v404
    %v578 = vunpack.c.l.b16 %v405
    %v579 = vunpack.c.l.b16 %v406
    %v580 = vunpack.c.h.b16 %v406
    %v581 = vunpack.c.l.b16 %v407
    %v582 = vunpack.c.l.b16 %v408
    %v583 = vunpack.c.h.b16 %v408
    %v584 = vunpack.c.l.b16 %v409
    %v585 = vunpack.c.l.b16 %v410
    %v586 = vunpack.c.h.b16 %v410
    %v587 = vunpack.c.l.b16 %v411
    %v588 = vunpack.c.l.b16 %v412
    %v589 = vunpack.c.h.b16 %v412
    %v590 = vunpack.c.l.b16 %v413
    %v591 = vpack.c.b16 %v498, %v495
    %v592 = vpack.c.b16 %v499, %v496
    %v593 = vpack.c.b16 %v500, %v497
    %v594 = vpack.c.b16 %v504, %v501
    %v595 = vpack.c.b16 %v505, %v502
    %v596 = vpack.c.b16 %v506, %v503
    %v597 = vpack.c.b16 %v510, %v507
    %v598 = vpack.c.b16 %v511, %v508
    %v599 = vpack.c.b16 %v512, %v509
    %v600 = vpack.c.b16 %v516, %v513
    %v601 = vpack.c.b16 %v517, %v514
    %v602 = vpack.c.b16 %v518, %v515
    %v603 = vpack.c.b16 %v522, %v519
    %v604 = vpack.c.b16 %v523, %v520
    %v605 = vpack.c.b16 %v524, %v521
    %v606 = vpack.c.b16 %v528, %v525
    %v607 = vpack.c.b16 %v529, %v526
    %v608 = vpack.c.b16 %v530, %v527
    %v609 = vpack.c.b16 %v534, %v531
    %v610 = vpack.c.b16 %v535, %v532
    %v611 = vpack.c.b16 %v536, %v533
    %v612 = vpack.c.b16 %v540, %v537
    %v613 = vpack.c.b16 %v541, %v538
    %v614 = vpack.c.b16 %v542, %v539
    %v615 = vpack.c.b16 %v546, %v543
    %v616 = vpack.c.b16 %v547, %v544
    %v617 = vpack.c.b16 %v548, %v545
    %v618 = vpack.c.b16 %v552, %v549
    %v619 = vpack.c.b16 %v553, %v550
    %v620 = vpack.c.b16 %v554, %v551
    %v621 = vpack.c.b16 %v558, %v555
    %v622 = vpack.c.b16 %v559, %v556
    %v623 = vpack.c.b16 %v560, %v557
    %v624 = vpack.c.b16 %v564, %v561
    %v625 = vpack.c.b16 %v565, %v562
    %v626 = vpack.c.b16 %v566, %v563
    %v627 = vpack.c.b16 %v570, %v567
    %v628 = vpack.c.b16 %v571, %v568
    %v629 = vpack.c.b16 %v572, %v569
    %v630 = vpack.c.b16 %v576, %v573
    %v631 = vpack.c.b16 %v577, %v574
    %v632 = vpack.c.b16 %v578, %v575
    %v633 = vpack.c.b16 %v582, %v579
    %v634 = vpack.c.b16 %v583, %v580
    %v635 = vpack.c.b16 %v584, %v581
    %v636 = vpack.c.b16 %v588, %v585
    %v637 = vpack.c.b16 %v589, %v586
    %v638 = vpack.c.b16 %v590, %v587
    %687 = vmatprep.subr.bf16.mxu0 %v592
    %688 = vmatpush1.bf16.msra.mxu0 %v591
    %689 = vmatprep.subr.bf16.mxu0 %v595
    %690 = vmatpush1.bf16.msra.mxu0 %v594
    %691 = vmatprep.subr.bf16.mxu0 %v598
    %692 = vmatpush1.bf16.msra.mxu0 %v597
    %693 = vmatprep.subr.bf16.mxu0 %v601
    %694 = vmatpush1.bf16.msra.mxu0 %v600
    %695 = vmatprep.subr.bf16.mxu0 %v604
    %696 = vmatpush1.bf16.msra.mxu0 %v603
    %697 = vmatprep.subr.bf16.mxu0 %v607
    %698 = vmatpush1.bf16.msra.mxu0 %v606
    %699 = vmatprep.subr.bf16.mxu0 %v610
    %700 = vmatpush1.bf16.msra.mxu0 %v609
    %701 = vmatprep.subr.bf16.mxu0 %v613
    %702 = vmatpush1.bf16.msra.mxu0 %v612
    %703 = vmatprep.subr.bf16.mxu0 %v616
    %704 = vmatpush1.bf16.msra.mxu0 %v615
    %705 = vmatprep.subr.bf16.mxu0 %v619
    %706 = vmatpush1.bf16.msra.mxu0 %v618
    %707 = vmatprep.subr.bf16.mxu0 %v622
    %708 = vmatpush1.bf16.msra.mxu0 %v621
    %709 = vmatprep.subr.bf16.mxu0 %v625
    %710 = vmatpush1.bf16.msra.mxu0 %v624
    %711 = vmatprep.subr.bf16.mxu0 %v628
    %712 = vmatpush1.bf16.msra.mxu0 %v627
    %713 = vmatprep.subr.bf16.mxu0 %v631
    %714 = vmatpush1.bf16.msra.mxu0 %v630
    %715 = vmatprep.subr.bf16.mxu0 %v634
    %716 = vmatpush1.bf16.msra.mxu0 %v633
    %717 = vmatprep.subr.bf16.mxu0 %v637
    %718 = vmatpush1.bf16.msra.mxu0 %v636
    %719 = vmatprep.mubr.bf16.mxu0 %v349
    %720 = vmatmul.mubr.bf16.gmra.mrb[0].mxu0 %v348
    %v721 = vpop.f32.mrb[0].mxu0
    %v722 = vadd.f32 %v419, %v721
    %v723 = vpop.f32.mrb[0].mxu0
    %v724 = vadd.f32 %v423, %v723
    %v725 = vpop.f32.mrb[0].mxu0
    %v726 = vadd.f32 %v419, %v725
    %v727 = vpop.f32.mrb[0].mxu0
    %v728 = vadd.f32 %v423, %v727
    %729 = vdwg.mxu0
    %730 = vmatprep.subr.bf16.mxu0 0
    %731 = vmatpush1.bf16.msra.mxu0 %v593
    %732 = vmatprep.subr.bf16.mxu0 0
    %733 = vmatpush1.bf16.msra.mxu0 %v596
    %734 = vmatprep.subr.bf16.mxu0 0
    %735 = vmatpush1.bf16.msra.mxu0 %v599
    %736 = vmatprep.subr.bf16.mxu0 0
    %737 = vmatpush1.bf16.msra.mxu0 %v602
    %738 = vmatprep.subr.bf16.mxu0 0
    %739 = vmatpush1.bf16.msra.mxu0 %v605
    %740 = vmatprep.subr.bf16.mxu0 0
    %741 = vmatpush1.bf16.msra.mxu0 %v608
    %742 = vmatprep.subr.bf16.mxu0 0
    %743 = vmatpush1.bf16.msra.mxu0 %v611
    %744 = vmatprep.subr.bf16.mxu0 0
    %745 = vmatpush1.bf16.msra.mxu0 %v614
    %746 = vmatprep.subr.bf16.mxu0 0
    %747 = vmatpush1.bf16.msra.mxu0 %v617
    %748 = vmatprep.subr.bf16.mxu0 0
    %749 = vmatpush1.bf16.msra.mxu0 %v620
    %750 = vmatprep.subr.bf16.mxu0 0
    %751 = vmatpush1.bf16.msra.mxu0 %v623
    %752 = vmatprep.subr.bf16.mxu0 0
    %753 = vmatpush1.bf16.msra.mxu0 %v626
    %754 = vmatprep.subr.bf16.mxu0 0
    %755 = vmatpush1.bf16.msra.mxu0 %v629
    %756 = vmatprep.subr.bf16.mxu0 0
    %757 = vmatpush1.bf16.msra.mxu0 %v632
    %758 = vmatprep.subr.bf16.mxu0 0
    %759 = vmatpush1.bf16.msra.mxu0 %v635
    %760 = vmatprep.subr.bf16.mxu0 0
    %761 = vmatpush1.bf16.msra.mxu0 %v638
    %762 = vmatprep.mubr.bf16.mxu0 %v349
    %763 = vmatmul.mubr.bf16.gmra.mrb[0].mxu0 %v348
    %v764 = vpop.f32.mrb[0].mxu0
    %v765 = vadd.f32 %v427, %v764
    %v766 = vpop.f32.mrb[0].mxu0
    %v767 = vpop.f32.mrb[0].mxu0
    %v768 = vadd.f32 %v427, %v767
    %v769 = vpop.f32.mrb[0].mxu0
    %770 = vdwg.mxu0
    %771 = vst [vmem:[#allocation8] sm:$0xff] %v722
    %772 = vst [vmem:[#allocation8 + $0x8] sm:$0xff] %v724
    %773 = vst [vmem:[#allocation8 + $0x10] sm:$0xff] %v765
    %774 = vst [vmem:[#allocation8 + $0x18] sm:$0xff] %v726
    %775 = vst [vmem:[#allocation8 + $0x20] sm:$0xff] %v728
    %776 = vst [vmem:[#allocation8 + $0x28] sm:$0xff] %v768
    // Predicated region
    $region34: #{mlp2_forward_padded.1} parent=1 // pred_check
      _
    $region35: #{mlp2_forward_padded.1} parent=1 // pred_check_branch
      %778 = sbr.rel (0) target = $region37
    $region36: #{mlp2_forward_padded.1} parent=1 // pred_region
      %s779 = sadd.s32 0, 0
      %s780 = smul.u32 3, %s779
      %s782 = ssub.s32 768, 768
      %783 = vsyncadd [#allocation5], %s782
      %s784 = smul.addr %s780, 128
      %s785 = scalar_lea.hbm %s5, %s784
      %s786 = sshll.u32 [#allocation8], 4
      %s787 = int_to_ptr.vmem [resolvable:$true] %s786
      %792 = dma.vmem_to_hbm [thread:$0]  %s787, 768, %s785, [#allocation5], 384, 384, 24
    $region37: #{mlp2_forward_padded.1} parent=1 // pred_fallthru
      _
    // Predicated region
    $region38: #{mlp2_forward_padded.1} parent=1 // pred_check
      _
    $region39: #{mlp2_forward_padded.1} parent=1 // pred_check_branch
      %794 = sbr.rel (0) target = $region41
    $region40: #{mlp2_forward_padded.1} parent=1 // pred_region
      %795 = dma.done [#allocation5], 768
    $region41: #{mlp2_forward_padded.1} parent=1 // pred_fallthru
      _
    %796 = vsyncpa [#allocation4], 1
    %797 = vsyncpa [#allocation7], 1
    %798 = vsyncpa [#allocation5], 1

</llo_original>
